<compile_context>
chip_gen: v6e
topology: v6e:2x2x1
jax: 0.10.0
libtpu: 0.0.40
codegen_flags: <defaults>
</compile_context>

<pallas_src>
import functools
import numpy as np
import jax
import jax.numpy as jnp
from jax.experimental import pallas as pl
from jax.experimental.pallas import tpu as pltpu


# ----------------------------------------------------------------------------
# Host-side (numpy) weight/index tables — exact port of BicubicResize.contributions
# ----------------------------------------------------------------------------
KERNEL_WIDTH = 4.0


def _cubic(x):
    absx = np.abs(x)
    absx2 = absx * absx
    absx3 = absx2 * absx
    return ((1.5 * absx3 - 2.5 * absx2 + 1) * (absx <= 1)
            + (-0.5 * absx3 + 2.5 * absx2 - 4 * absx + 2) * ((1 < absx) & (absx <= 2)))


def _contributions(in_length, out_length, scale, k_width=KERNEL_WIDTH):
    if scale < 1:
        h = lambda x: scale * _cubic(scale * x)
        kernel_width = 1.0 * k_width / scale
    else:
        h = _cubic
        kernel_width = k_width
    x = np.arange(1, out_length + 1).astype(np.float64)
    u = x / scale + 0.5 * (1 - 1 / scale)
    left = np.floor(u - kernel_width / 2)
    P = int(np.ceil(kernel_width)) + 2
    ind = np.expand_dims(left, axis=1) + np.arange(P) - 1
    indices = ind.astype(np.int64)
    weights = h(np.expand_dims(u, axis=1) - indices - 1)
    weights = weights / np.sum(weights, axis=1, keepdims=True)
    aux = np.concatenate((np.arange(in_length),
                          np.arange(in_length - 1, -1, -1))).astype(np.int64)
    indices = aux[np.mod(indices, aux.size)]
    return weights, indices  # (out, P) float64, (out, P) int64


def _round_up(a, b):
    return ((a + b - 1) // b) * b


def _dense_resize_matrix(in_length, out_length, scale):
    """Fold gather + weighted sum into a dense (out, in) matrix (scatter-add)."""
    w, ind = _contributions(in_length, out_length, scale)
    R = np.zeros((out_length, in_length), dtype=np.float64)
    rows = np.broadcast_to(np.arange(out_length)[:, None], ind.shape)
    np.add.at(R, (rows, ind), w)   # mirrored duplicate indices accumulate, as the sum over P does
    return R.astype(np.float32)


# ----------------------------------------------------------------------------
# Pallas kernel: per tile of planes, out = R_h @ plane @ R_w^T
#   - one pass batched (2-operand einsum, weights stationary), one pass as a single flat matmul
# ----------------------------------------------------------------------------
def _bicubic_kernel(x_ref, rh_ref, rwt_ref, o_ref, *, h_first):
    # x_ref:   (tm, H, W)       input planes (batch*channel fused on the grid axis)
    # rh_ref:  (Hop, H)         dense H-resize matrix, rows padded to a multiple of 8
    # rwt_ref: (W, Wop)         dense W-resize matrix (transposed), cols possibly 128-padded
    # o_ref:   (tm, Hop, Wop)
    tm, H, W = x_ref.shape
    Hop = rh_ref.shape[0]
    Wop = rwt_ref.shape[1]
    x = x_ref[...]
    if h_first:
        # Batched H-pass, weights stationary (no broadcast_to): (Hop,H) x (tm,H,W) -> (tm,Hop,W)
        t = jnp.einsum('oh,mhw->mow', rh_ref[...], x,
                       preferred_element_type=jnp.float32)
        # Flat W-pass: one big MXU matmul (tm*Hop, W) @ (W, Wop)
        y = jnp.dot(t.reshape(tm * Hop, W), rwt_ref[...],
                    preferred_element_type=jnp.float32)
        o_ref[...] = y.reshape(tm, Hop, Wop).astype(o_ref.dtype)
    else:
        # Flat W-pass first: (tm*H, W) @ (W, Wop)
        t = jnp.dot(x.reshape(tm * H, W), rwt_ref[...],
                    preferred_element_type=jnp.float32).reshape(tm, H, Wop)
        # Batched H-pass: (Hop,H) x (tm,H,Wop) -> (tm,Hop,Wop)
        y = jnp.einsum('oh,mhq->moq', rh_ref[...], t,
                       preferred_element_type=jnp.float32)
        o_ref[...] = y.astype(o_ref.dtype)


def _vmem_budget_bytes():
    try:
        cap = int(pltpu.get_tpu_info().vmem_capacity_bytes)
    except Exception:
        cap = 64 << 20          # conservative fallback = v7x physical VMEM per TC
    return (cap * 3) // 4       # 48 MiB on v7x, 96 MiB on v5e/v6e


def _num_tensorcores():
    try:
        kind = jax.devices()[0].device_kind.lower()
    except Exception:
        return 1
    return 2 if ("v7" in kind or "tpu7" in kind) else 1


def bicubic_resize_pallas(x, rh_pad, rwt_pad, h_out, w_out, h_first):
    """x: (B, C, H, W) -> (B, C, h_out, w_out) float32."""
    B, C, H, W = x.shape
    Hop = rh_pad.shape[0]
    Wop = rwt_pad.shape[1]
    M = B * C
    xm = x.reshape(M, H, W)                     # free reshape, keep native dtype (no upcast)

    # --- plane-tile sizing (corrected: residents & intermediate not double-buffered per plane)
    in_plane = x.dtype.itemsize * H * W
    out_plane = 4 * Hop * Wop
    inter_plane = 4 * (Hop * W if h_first else H * Wop)
    resident = 2 * 4 * (Hop * H + W * Wop)      # weight matrices, default double-buffered
    budget = _vmem_budget_bytes()
    avail = max(budget - resident - (1 << 20), 2 * (in_plane + out_plane) + inter_plane)
    tm = max(1, min(M, avail // (2 * (in_plane + out_plane) + inter_plane)))
    if _num_tensorcores() >= 2 and M > 1:
        tm = min(tm, pl.cdiv(M, 2))             # >=2 grid steps so both v7x TCs get work
    num_steps = pl.cdiv(M, tm)
    tm = pl.cdiv(M, num_steps)                  # balance steps -> minimal plane padding
    M_pad = num_steps * tm
    if M_pad != M:
        xm = jnp.pad(xm, ((0, M_pad - M), (0, 0), (0, 0)))

    per_plane_flops = (Hop * H * W + Hop * W * Wop) if h_first else (H * W * Wop + Hop * H * Wop)
    flops = 2 * M_pad * per_plane_flops
    bytes_accessed = (x.dtype.itemsize * M_pad * H * W + 4 * M_pad * Hop * Wop
                      + 4 * (Hop * H + W * Wop))

    out = pl.pallas_call(
        functools.partial(_bicubic_kernel, h_first=h_first),
        out_shape=jax.ShapeDtypeStruct((M_pad, Hop, Wop), jnp.float32),
        grid=(num_steps,),
        in_specs=[
            pl.BlockSpec((tm, H, W), lambda i: (i, 0, 0)),    # plane tile
            pl.BlockSpec((Hop, H), lambda i: (0, 0)),         # resident H-resize matrix
            pl.BlockSpec((W, Wop), lambda i: (0, 0)),         # resident W-resize matrix (T)
        ],
        out_specs=pl.BlockSpec((tm, Hop, Wop), lambda i: (i, 0, 0)),
        compiler_params=pltpu.CompilerParams(
            dimension_semantics=("parallel",),
            vmem_limit_bytes=int(budget)),
        cost_estimate=pl.CostEstimate(flops=flops, transcendentals=0,
                                      bytes_accessed=bytes_accessed),
    )(xm, rh_pad, rwt_pad)

    return out[:M, :h_out, :w_out].reshape(B, C, h_out, w_out)


# ----------------------------------------------------------------------------
# Module wrapper (mirrors BicubicResize.__init__ / set_scale / forward)
# ----------------------------------------------------------------------------
class BicubicResize:
    def __init__(self, scale, im_size):
        self.scale = (float(scale[0]), float(scale[1]))
        self.input_size = (int(im_size[0]), int(im_size[1]))
        self.output_size = (int(np.ceil(self.scale[0] * self.input_size[0])),
                            int(np.ceil(self.scale[1] * self.input_size[1])))
        H, W = self.input_size
        H_out, W_out = self.output_size

        rh = _dense_resize_matrix(H, H_out, self.scale[0])
        rw = _dense_resize_matrix(W, W_out, self.scale[1])

        # Output rows (sublanes) -> multiple of 8.
        Hop = _round_up(H_out, 8)
        # Output cols (lanes) -> multiple of 128 only when the pad overhead is modest;
        # heavy downscales keep W_out narrow (masked stores beat a 16x HBM-write blowup).
        Wop = _round_up(W_out, 128) if (W_out % 128 == 0 or W_out >= 96) else W_out
        # TODO(synk): for heavy downscales, pack several planes' (H_out*W_out) along the lane
        # dim in out_specs for fully lane-dense unmasked stores.

        rh_p = np.zeros((Hop, H), np.float32)
        rh_p[:H_out] = rh
        rwt_p = np.zeros((W, Wop), np.float32)
        rwt_p[:, :W_out] = rw.T
        self.rh_pad = jnp.asarray(rh_p)     # weights stay f32 (correctness vs reference)
        self.rwt_pad = jnp.asarray(rwt_p)

        # Pass order by MXU FLOPs (padded dims); tie-break follows the reference's
        # argsort(scale) order (shrinking dimension first).
        f_h_first = Hop * H * W + Hop * W * Wop
        f_w_first = H * W * Wop + Hop * H * Wop
        if f_h_first != f_w_first:
            self.h_first = f_h_first < f_w_first
        else:
            self.h_first = self.scale[0] <= self.scale[1]

    def __call__(self, x):
        return bicubic_resize_pallas(x, self.rh_pad, self.rwt_pad,
                                     self.output_size[0], self.output_size[1],
                                     self.h_first)


# ----------------------------------------------------------------------------
# Pure-numpy reference mirroring the PyTorch forward (gather + weighted sum per dim,
# applied in argsort(scale) order)
# ----------------------------------------------------------------------------
def _reference_numpy(x_np, scale, in_size):
    out_size = (int(np.ceil(scale[0] * in_size[0])), int(np.ceil(scale[1] * in_size[1])))
    weights, indices = [], []
    for k in range(2):
        w, ind = _contributions(in_size[k], out_size[k], scale[k])
        weights.append(w.astype(np.float32))
        indices.append(ind)
    y = np.transpose(x_np, (0, 2, 3, 1)).astype(np.float32)      # NCHW -> NHWC
    order = np.argsort(np.array(scale), kind="stable")
    for k in range(2):
        dim = int(order[k])
        w, ind = weights[dim], indices[dim]
        if dim == 0:
            sl = y[:, ind, :, :]                                  # (B, out_h, P, W, C)
            y = np.einsum('op,bopwc->bowc', w, sl)
        else:
            sl = y[:, :, ind, :]                                  # (B, H, out_w, P, C)
            y = np.einsum('op,bhopc->bhoc', w, sl)
    return np.transpose(y, (0, 3, 1, 2))                          # NHWC -> NCHW


if __name__ == "__main__":
    B, C, H, W = 2, 4, 16, 16
    key = jax.random.PRNGKey(0)
    x = jax.random.normal(key, (B, C, H, W), dtype=jnp.float32)

    ok = True
    for scale in [(0.5, 0.5), (2.0, 0.5)]:      # exercises both pass orders
        resize = BicubicResize(scale, (H, W))
        out = jax.block_until_ready(resize(x))
        H_out, W_out = resize.output_size
        assert out.shape == (B, C, H_out, W_out), (scale, out.shape)
        ref = _reference_numpy(np.asarray(x), scale, (H, W))
        err = float(np.max(np.abs(np.asarray(out) - ref)))
        if not np.allclose(np.asarray(out), ref, atol=1e-4, rtol=1e-4):
            ok = False
            print(f"MISMATCH scale={scale} max_abs_err={err}")
    if ok:
        print("KERNEL_OK")
</pallas_src>

<mosaic_0001>
module attributes {stable_mosaic.version = 11 : i64} {
  func.func @_bicubic_kernel(%arg0: i32, %arg1: memref<8x16x16xf32, #tpu.memory_space<vmem>>, %arg2: memref<8x16xf32, #tpu.memory_space<vmem>>, %arg3: memref<16x8xf32, #tpu.memory_space<vmem>>, %arg4: memref<8x8x8xf32, #tpu.memory_space<vmem>>) attributes {dimension_semantics = [#tpu.dimension_semantics<parallel>], iteration_bounds = array<i64: 1>, scalar_prefetch = 0 : i64, scratch_operands = 0 : i64, tpu.core_type = #tpu.core_type<tc>, window_params = [{transform_indices = @transform_0, window_bounds = array<i64: 8, 16, 16>}, {pipeline_mode = #tpu.pipeline_mode<synchronous>, transform_indices = @transform_1, window_bounds = array<i64: 8, 16>}, {pipeline_mode = #tpu.pipeline_mode<synchronous>, transform_indices = @transform_2, window_bounds = array<i64: 16, 8>}, {transform_indices = @transform_3, window_bounds = array<i64: 8, 8, 8>}]} {
    %c0 = arith.constant 0 : index
    %c0_0 = arith.constant 0 : index
    %c0_1 = arith.constant 0 : index
    %0 = vector.load %arg1[%c0, %c0_0, %c0_1] : memref<8x16x16xf32, #tpu.memory_space<vmem>>, vector<8x16x16xf32>
    %c0_2 = arith.constant 0 : index
    %c0_3 = arith.constant 0 : index
    %1 = vector.load %arg2[%c0_2, %c0_3] : memref<8x16xf32, #tpu.memory_space<vmem>>, vector<8x16xf32>
    "tpu.trace_start"() <{level = 10 : i32, message = "oh,mhw->mow"}> : () -> ()
    %cst = arith.constant dense<0.000000e+00> : vector<8x16x8xf32>
    %2 = tpu.matmul %0, %1, %cst {dimension_numbers = #tpu.dot_dimension_numbers<[1], [1], [0, 2], [0], [0, 0, 0, 2, 1, 0], [], []>} : vector<8x16x16xf32>, vector<8x16xf32>, vector<8x16x8xf32> -> vector<8x16x8xf32>
    %3 = tpu.transpose %2, [0, 2, 1] : vector<8x16x8xf32> -> vector<8x8x16xf32>
    "tpu.trace_stop"() : () -> ()
    %4 = vector.shape_cast %3 : vector<8x8x16xf32> to vector<64x16xf32>
    %c0_4 = arith.constant 0 : index
    %c0_5 = arith.constant 0 : index
    %5 = vector.load %arg3[%c0_4, %c0_5] : memref<16x8xf32, #tpu.memory_space<vmem>>, vector<16x8xf32>
    %cst_6 = arith.constant dense<0.000000e+00> : vector<64x8xf32>
    %6 = tpu.matmul %4, %5, %cst_6 {dimension_numbers = #tpu.dot_dimension_numbers<[1], [0], [0], [1], [0, 0, 1, 1], [], []>} : vector<64x16xf32>, vector<16x8xf32>, vector<64x8xf32> -> vector<64x8xf32>
    %7 = vector.shape_cast %6 : vector<64x8xf32> to vector<8x8x8xf32>
    %c0_7 = arith.constant 0 : index
    %c0_8 = arith.constant 0 : index
    %c0_9 = arith.constant 0 : index
    %8 = vector.load %arg4[%c0_7, %c0_8, %c0_9] : memref<8x8x8xf32, #tpu.memory_space<vmem>>, vector<8x8x8xf32>
    tpu.vector_store %arg4[%c0_7, %c0_8, %c0_9], %7 {strides = array<i32>} : memref<8x8x8xf32, #tpu.memory_space<vmem>>, vector<8x8x8xf32>,
    return
  }
  func.func @transform_0(%arg0: i32) -> (i32, i32, i32) {
    %c0_i32 = arith.constant 0 : i32
    %c0_i32_0 = arith.constant 0 : i32
    %c0_i32_1 = arith.constant 0 : i32
    return %arg0, %c0_i32, %c0_i32_0 : i32, i32, i32
  }
  func.func @transform_1(%arg0: i32) -> (i32, i32) {
    %c0_i32 = arith.constant 0 : i32
    %c0_i32_0 = arith.constant 0 : i32
    %c0_i32_1 = arith.constant 0 : i32
    return %c0_i32, %c0_i32_0 : i32, i32
  }
  func.func @transform_2(%arg0: i32) -> (i32, i32) {
    %c0_i32 = arith.constant 0 : i32
    %c0_i32_0 = arith.constant 0 : i32
    %c0_i32_1 = arith.constant 0 : i32
    return %c0_i32, %c0_i32_0 : i32, i32
  }
  func.func @transform_3(%arg0: i32) -> (i32, i32, i32) {
    %c0_i32 = arith.constant 0 : i32
    %c0_i32_0 = arith.constant 0 : i32
    %c0_i32_1 = arith.constant 0 : i32
    return %arg0, %c0_i32, %c0_i32_0 : i32, i32, i32
  }
}

</mosaic_0001>

<llo_original>
// kernel: tpu_custom_call.1
$region0: #{tpu_custom_call.1}
  #allocation0 [shape = 'u32[]', space=smem, size = 0x4, offset = 0x4, fixed_abs, tag = 'smem constant byte address 0x4 - core index']
  #allocation1 [shape = 'u32[144,128]{1,0:T(1,128)}', space=vmem, size = 0x12000, scoped, tag = 'internal scratch']
  %s0 = inlined_call_operand.hbm [shape: f32[8,16,16], index: 0, kind: input, shape index: {}]
  %s1 = inlined_call_operand.vmem [shape: f32[8,16], index: 1, kind: input, shape index: {}]
  %s2 = inlined_call_operand.vmem [shape: f32[16,8], index: 2, kind: input, shape index: {}]
  %s3 = inlined_call_operand.hbm [shape: f32[8,8,8], index: 3, kind: output, shape index: {}]
  %s4 = sld [smem:[#allocation0]]
  $region26: #{tpu_custom_call.1} parent=0
    _
  %s6 = ssub.s32 1, %s4
  %s7 = scalar_select 0, %s6, %s4
  $region1: #{tpu_custom_call.1} parent=0
    #allocation2 [shape = 'u8[65536]{0}', space=vmem, size = 0x10000, scoped, tag = 'input window, operand 0, single buffered']
    #allocation3 [shape = 's32[1]{0}', space=sflag, size = 0x4, scoped, tag = 'scoped memory for tpu_custom_call.1']
    #allocation4 [shape = 's32[1]{0}', space=sflag, size = 0x4, scoped, tag = 'scoped memory for tpu_custom_call.1']
    #allocation5 [shape = 'u8[32768]{0}', space=vmem, size = 0x8000, scoped, tag = 'output window, operand 0, single buffered']
    %8 = vsyncpa [#allocation3], 0
    %9 = vsyncpa [#allocation4], 0
    // Predicated region
    $region2: #{tpu_custom_call.1} parent=1 // pred_check
      _
    $region3: #{tpu_custom_call.1} parent=1 // pred_check_branch
      %11 = sbr.rel (0) target = $region5
    $region4: #{tpu_custom_call.1} parent=1 // pred_region
      %s13 = ssub.s32 2048, 2048
      %14 = vsyncadd [#allocation3], %s13
      %s15 = sshll.u32 [#allocation2], 4
      %s16 = int_to_ptr.vmem [resolvable:$true] %s15
      %21 = dma.hbm_to_vmem [thread:$0]  %s0, 2048, %s16, [#allocation3], 128, 128, 8
    $region5: #{tpu_custom_call.1} parent=1 // pred_fallthru
      _
    // Predicated region
    $region6: #{tpu_custom_call.1} parent=1 // pred_check
      _
    $region7: #{tpu_custom_call.1} parent=1 // pred_check_branch
      %23 = sbr.rel (0) target = $region9
    $region8: #{tpu_custom_call.1} parent=1 // pred_region
      _
    $region9: #{tpu_custom_call.1} parent=1 // pred_fallthru
      _
    // Predicated region
    $region10: #{tpu_custom_call.1} parent=1 // pred_check
      _
    $region11: #{tpu_custom_call.1} parent=1 // pred_check_branch
      %25 = sbr.rel (0) target = $region13
    $region12: #{tpu_custom_call.1} parent=1 // pred_region
      _
    $region13: #{tpu_custom_call.1} parent=1 // pred_fallthru
      _
    // Predicated region
    $region14: #{tpu_custom_call.1} parent=1 // pred_check
      _
    $region15: #{tpu_custom_call.1} parent=1 // pred_check_branch
      %27 = sbr.rel (0) target = $region17
    $region16: #{tpu_custom_call.1} parent=1 // pred_region
      %28 = dma.done [#allocation3], 2048
    $region17: #{tpu_custom_call.1} parent=1 // pred_fallthru
      _
    %v29 = vld [vmem:[#allocation2] sm:$0xff]
    %v30 = vld [vmem:[#allocation2 + $0x8] sm:$0xff]
    %v31 = vld [vmem:[#allocation2 + $0x10] sm:$0xff]
    %v32 = vld [vmem:[#allocation2 + $0x18] sm:$0xff]
    %v33 = vld [vmem:[#allocation2 + $0x20] sm:$0xff]
    %v34 = vld [vmem:[#allocation2 + $0x28] sm:$0xff]
    %v35 = vld [vmem:[#allocation2 + $0x30] sm:$0xff]
    %v36 = vld [vmem:[#allocation2 + $0x38] sm:$0xff]
    %v37 = vld [vmem:[#allocation2 + $0x40] sm:$0xff]
    %v38 = vld [vmem:[#allocation2 + $0x48] sm:$0xff]
    %v39 = vld [vmem:[#allocation2 + $0x50] sm:$0xff]
    %v40 = vld [vmem:[#allocation2 + $0x58] sm:$0xff]
    %v41 = vld [vmem:[#allocation2 + $0x60] sm:$0xff]
    %v42 = vld [vmem:[#allocation2 + $0x68] sm:$0xff]
    %v43 = vld [vmem:[#allocation2 + $0x70] sm:$0xff]
    %v44 = vld [vmem:[#allocation2 + $0x78] sm:$0xff]
    %v45 = vld [vmem:[%s1] sm:$0xff]
    %46 = vxpose.xlu0.b32.start [1/16] %v29, 128
    %47 = vxpose.xlu0.b32.cont [2/16] %v30, 128
    %48 = vxpose.xlu0.b32.cont [3/16] 0.0, 128
    %49 = vxpose.xlu0.b32.cont [4/16] 0.0, 128
    %50 = vxpose.xlu0.b32.cont [5/16] 0.0, 128
    %51 = vxpose.xlu0.b32.cont [6/16] 0.0, 128
    %52 = vxpose.xlu0.b32.cont [7/16] 0.0, 128
    %53 = vxpose.xlu0.b32.cont [8/16] 0.0, 128
    %54 = vxpose.xlu0.b32.cont [9/16] 0.0, 128
    %55 = vxpose.xlu0.b32.cont [10/16] 0.0, 128
    %56 = vxpose.xlu0.b32.cont [11/16] 0.0, 128
    %57 = vxpose.xlu0.b32.cont [12/16] 0.0, 128
    %58 = vxpose.xlu0.b32.cont [13/16] 0.0, 128
    %59 = vxpose.xlu0.b32.cont [14/16] 0.0, 128
    %60 = vxpose.xlu0.b32.cont [15/16] 0.0, 128
    %61 = vxpose.xlu0.b32.end [16/16] 0.0, 128
    %v62 = vpop.trf.xlu0
    %v63 = vpop.trf.xlu0
    %v64 = vpop.trf.xlu0
    %v65 = vpop.trf.xlu0
    %v66 = vpop.trf.xlu0
    %v67 = vpop.trf.xlu0
    %v68 = vpop.trf.xlu0
    %v69 = vpop.trf.xlu0
    %v70 = vpop.trf.xlu0
    %v71 = vpop.trf.xlu0
    %v72 = vpop.trf.xlu0
    %v73 = vpop.trf.xlu0
    %v74 = vpop.trf.xlu0
    %v75 = vpop.trf.xlu0
    %v76 = vpop.trf.xlu0
    %v77 = vpop.trf.xlu0
    %78 = vxpose.xlu0.b32.start [1/16] %v31, 128
    %79 = vxpose.xlu0.b32.cont [2/16] %v32, 128
    %80 = vxpose.xlu0.b32.cont [3/16] 0.0, 128
    %81 = vxpose.xlu0.b32.cont [4/16] 0.0, 128
    %82 = vxpose.xlu0.b32.cont [5/16] 0.0, 128
    %83 = vxpose.xlu0.b32.cont [6/16] 0.0, 128
    %84 = vxpose.xlu0.b32.cont [7/16] 0.0, 128
    %85 = vxpose.xlu0.b32.cont [8/16] 0.0, 128
    %86 = vxpose.xlu0.b32.cont [9/16] 0.0, 128
    %87 = vxpose.xlu0.b32.cont [10/16] 0.0, 128
    %88 = vxpose.xlu0.b32.cont [11/16] 0.0, 128
    %89 = vxpose.xlu0.b32.cont [12/16] 0.0, 128
    %90 = vxpose.xlu0.b32.cont [13/16] 0.0, 128
    %91 = vxpose.xlu0.b32.cont [14/16] 0.0, 128
    %92 = vxpose.xlu0.b32.cont [15/16] 0.0, 128
    %93 = vxpose.xlu0.b32.end [16/16] 0.0, 128
    %v94 = vpop.trf.xlu0
    %v95 = vpop.trf.xlu0
    %v96 = vpop.trf.xlu0
    %v97 = vpop.trf.xlu0
    %v98 = vpop.trf.xlu0
    %v99 = vpop.trf.xlu0
    %v100 = vpop.trf.xlu0
    %v101 = vpop.trf.xlu0
    %v102 = vpop.trf.xlu0
    %v103 = vpop.trf.xlu0
    %v104 = vpop.trf.xlu0
    %v105 = vpop.trf.xlu0
    %v106 = vpop.trf.xlu0
    %v107 = vpop.trf.xlu0
    %v108 = vpop.trf.xlu0
    %v109 = vpop.trf.xlu0
    %110 = vxpose.xlu0.b32.start [1/16] %v33, 128
    %111 = vxpose.xlu0.b32.cont [2/16] %v34, 128
    %112 = vxpose.xlu0.b32.cont [3/16] 0.0, 128
    %113 = vxpose.xlu0.b32.cont [4/16] 0.0, 128
    %114 = vxpose.xlu0.b32.cont [5/16] 0.0, 128
    %115 = vxpose.xlu0.b32.cont [6/16] 0.0, 128
    %116 = vxpose.xlu0.b32.cont [7/16] 0.0, 128
    %117 = vxpose.xlu0.b32.cont [8/16] 0.0, 128
    %118 = vxpose.xlu0.b32.cont [9/16] 0.0, 128
    %119 = vxpose.xlu0.b32.cont [10/16] 0.0, 128
    %120 = vxpose.xlu0.b32.cont [11/16] 0.0, 128
    %121 = vxpose.xlu0.b32.cont [12/16] 0.0, 128
    %122 = vxpose.xlu0.b32.cont [13/16] 0.0, 128
    %123 = vxpose.xlu0.b32.cont [14/16] 0.0, 128
    %124 = vxpose.xlu0.b32.cont [15/16] 0.0, 128
    %125 = vxpose.xlu0.b32.end [16/16] 0.0, 128
    %v126 = vpop.trf.xlu0
    %v127 = vpop.trf.xlu0
    %v128 = vpop.trf.xlu0
    %v129 = vpop.trf.xlu0
    %v130 = vpop.trf.xlu0
    %v131 = vpop.trf.xlu0
    %v132 = vpop.trf.xlu0
    %v133 = vpop.trf.xlu0
    %v134 = vpop.trf.xlu0
    %v135 = vpop.trf.xlu0
    %v136 = vpop.trf.xlu0
    %v137 = vpop.trf.xlu0
    %v138 = vpop.trf.xlu0
    %v139 = vpop.trf.xlu0
    %v140 = vpop.trf.xlu0
    %v141 = vpop.trf.xlu0
    %142 = vxpose.xlu0.b32.start [1/16] %v35, 128
    %143 = vxpose.xlu0.b32.cont [2/16] %v36, 128
    %144 = vxpose.xlu0.b32.cont [3/16] 0.0, 128
    %145 = vxpose.xlu0.b32.cont [4/16] 0.0, 128
    %146 = vxpose.xlu0.b32.cont [5/16] 0.0, 128
    %147 = vxpose.xlu0.b32.cont [6/16] 0.0, 128
    %148 = vxpose.xlu0.b32.cont [7/16] 0.0, 128
    %149 = vxpose.xlu0.b32.cont [8/16] 0.0, 128
    %150 = vxpose.xlu0.b32.cont [9/16] 0.0, 128
    %151 = vxpose.xlu0.b32.cont [10/16] 0.0, 128
    %152 = vxpose.xlu0.b32.cont [11/16] 0.0, 128
    %153 = vxpose.xlu0.b32.cont [12/16] 0.0, 128
    %154 = vxpose.xlu0.b32.cont [13/16] 0.0, 128
    %155 = vxpose.xlu0.b32.cont [14/16] 0.0, 128
    %156 = vxpose.xlu0.b32.cont [15/16] 0.0, 128
    %157 = vxpose.xlu0.b32.end [16/16] 0.0, 128
    %v158 = vpop.trf.xlu0
    %v159 = vpop.trf.xlu0
    %v160 = vpop.trf.xlu0
    %v161 = vpop.trf.xlu0
    %v162 = vpop.trf.xlu0
    %v163 = vpop.trf.xlu0
    %v164 = vpop.trf.xlu0
    %v165 = vpop.trf.xlu0
    %v166 = vpop.trf.xlu0
    %v167 = vpop.trf.xlu0
    %v168 = vpop.trf.xlu0
    %v169 = vpop.trf.xlu0
    %v170 = vpop.trf.xlu0
    %v171 = vpop.trf.xlu0
    %v172 = vpop.trf.xlu0
    %v173 = vpop.trf.xlu0
    %174 = vxpose.xlu0.b32.start [1/16] %v37, 128
    %175 = vxpose.xlu0.b32.cont [2/16] %v38, 128
    %176 = vxpose.xlu0.b32.cont [3/16] 0.0, 128
    %177 = vxpose.xlu0.b32.cont [4/16] 0.0, 128
    %178 = vxpose.xlu0.b32.cont [5/16] 0.0, 128
    %179 = vxpose.xlu0.b32.cont [6/16] 0.0, 128
    %180 = vxpose.xlu0.b32.cont [7/16] 0.0, 128
    %181 = vxpose.xlu0.b32.cont [8/16] 0.0, 128
    %182 = vxpose.xlu0.b32.cont [9/16] 0.0, 128
    %183 = vxpose.xlu0.b32.cont [10/16] 0.0, 128
    %184 = vxpose.xlu0.b32.cont [11/16] 0.0, 128
    %185 = vxpose.xlu0.b32.cont [12/16] 0.0, 128
    %186 = vxpose.xlu0.b32.cont [13/16] 0.0, 128
    %187 = vxpose.xlu0.b32.cont [14/16] 0.0, 128
    %188 = vxpose.xlu0.b32.cont [15/16] 0.0, 128
    %189 = vxpose.xlu0.b32.end [16/16] 0.0, 128
    %v190 = vpop.trf.xlu0
    %v191 = vpop.trf.xlu0
    %v192 = vpop.trf.xlu0
    %v193 = vpop.trf.xlu0
    %v194 = vpop.trf.xlu0
    %v195 = vpop.trf.xlu0
    %v196 = vpop.trf.xlu0
    %v197 = vpop.trf.xlu0
    %v198 = vpop.trf.xlu0
    %v199 = vpop.trf.xlu0
    %v200 = vpop.trf.xlu0
    %v201 = vpop.trf.xlu0
    %v202 = vpop.trf.xlu0
    %v203 = vpop.trf.xlu0
    %v204 = vpop.trf.xlu0
    %v205 = vpop.trf.xlu0
    %206 = vxpose.xlu0.b32.start [1/16] %v39, 128
    %207 = vxpose.xlu0.b32.cont [2/16] %v40, 128
    %208 = vxpose.xlu0.b32.cont [3/16] 0.0, 128
    %209 = vxpose.xlu0.b32.cont [4/16] 0.0, 128
    %210 = vxpose.xlu0.b32.cont [5/16] 0.0, 128
    %211 = vxpose.xlu0.b32.cont [6/16] 0.0, 128
    %212 = vxpose.xlu0.b32.cont [7/16] 0.0, 128
    %213 = vxpose.xlu0.b32.cont [8/16] 0.0, 128
    %214 = vxpose.xlu0.b32.cont [9/16] 0.0, 128
    %215 = vxpose.xlu0.b32.cont [10/16] 0.0, 128
    %216 = vxpose.xlu0.b32.cont [11/16] 0.0, 128
    %217 = vxpose.xlu0.b32.cont [12/16] 0.0, 128
    %218 = vxpose.xlu0.b32.cont [13/16] 0.0, 128
    %219 = vxpose.xlu0.b32.cont [14/16] 0.0, 128
    %220 = vxpose.xlu0.b32.cont [15/16] 0.0, 128
    %221 = vxpose.xlu0.b32.end [16/16] 0.0, 128
    %v222 = vpop.trf.xlu0
    %v223 = vpop.trf.xlu0
    %v224 = vpop.trf.xlu0
    %v225 = vpop.trf.xlu0
    %v226 = vpop.trf.xlu0
    %v227 = vpop.trf.xlu0
    %v228 = vpop.trf.xlu0
    %v229 = vpop.trf.xlu0
    %v230 = vpop.trf.xlu0
    %v231 = vpop.trf.xlu0
    %v232 = vpop.trf.xlu0
    %v233 = vpop.trf.xlu0
    %v234 = vpop.trf.xlu0
    %v235 = vpop.trf.xlu0
    %v236 = vpop.trf.xlu0
    %v237 = vpop.trf.xlu0
    %238 = vxpose.xlu0.b32.start [1/16] %v41, 128
    %239 = vxpose.xlu0.b32.cont [2/16] %v42, 128
    %240 = vxpose.xlu0.b32.cont [3/16] 0.0, 128
    %241 = vxpose.xlu0.b32.cont [4/16] 0.0, 128
    %242 = vxpose.xlu0.b32.cont [5/16] 0.0, 128
    %243 = vxpose.xlu0.b32.cont [6/16] 0.0, 128
    %244 = vxpose.xlu0.b32.cont [7/16] 0.0, 128
    %245 = vxpose.xlu0.b32.cont [8/16] 0.0, 128
    %246 = vxpose.xlu0.b32.cont [9/16] 0.0, 128
    %247 = vxpose.xlu0.b32.cont [10/16] 0.0, 128
    %248 = vxpose.xlu0.b32.cont [11/16] 0.0, 128
    %249 = vxpose.xlu0.b32.cont [12/16] 0.0, 128
    %250 = vxpose.xlu0.b32.cont [13/16] 0.0, 128
    %251 = vxpose.xlu0.b32.cont [14/16] 0.0, 128
    %252 = vxpose.xlu0.b32.cont [15/16] 0.0, 128
    %253 = vxpose.xlu0.b32.end [16/16] 0.0, 128
    %v254 = vpop.trf.xlu0
    %v255 = vpop.trf.xlu0
    %v256 = vpop.trf.xlu0
    %v257 = vpop.trf.xlu0
    %v258 = vpop.trf.xlu0
    %v259 = vpop.trf.xlu0
    %v260 = vpop.trf.xlu0
    %v261 = vpop.trf.xlu0
    %v262 = vpop.trf.xlu0
    %v263 = vpop.trf.xlu0
    %v264 = vpop.trf.xlu0
    %v265 = vpop.trf.xlu0
    %v266 = vpop.trf.xlu0
    %v267 = vpop.trf.xlu0
    %v268 = vpop.trf.xlu0
    %v269 = vpop.trf.xlu0
    %270 = vxpose.xlu0.b32.start [1/16] %v43, 128
    %271 = vxpose.xlu0.b32.cont [2/16] %v44, 128
    %272 = vxpose.xlu0.b32.cont [3/16] 0.0, 128
    %273 = vxpose.xlu0.b32.cont [4/16] 0.0, 128
    %274 = vxpose.xlu0.b32.cont [5/16] 0.0, 128
    %275 = vxpose.xlu0.b32.cont [6/16] 0.0, 128
    %276 = vxpose.xlu0.b32.cont [7/16] 0.0, 128
    %277 = vxpose.xlu0.b32.cont [8/16] 0.0, 128
    %278 = vxpose.xlu0.b32.cont [9/16] 0.0, 128
    %279 = vxpose.xlu0.b32.cont [10/16] 0.0, 128
    %280 = vxpose.xlu0.b32.cont [11/16] 0.0, 128
    %281 = vxpose.xlu0.b32.cont [12/16] 0.0, 128
    %282 = vxpose.xlu0.b32.cont [13/16] 0.0, 128
    %283 = vxpose.xlu0.b32.cont [14/16] 0.0, 128
    %284 = vxpose.xlu0.b32.cont [15/16] 0.0, 128
    %285 = vxpose.xlu0.b32.end [16/16] 0.0, 128
    %v286 = vpop.trf.xlu0
    %v287 = vpop.trf.xlu0
    %v288 = vpop.trf.xlu0
    %v289 = vpop.trf.xlu0
    %v290 = vpop.trf.xlu0
    %v291 = vpop.trf.xlu0
    %v292 = vpop.trf.xlu0
    %v293 = vpop.trf.xlu0
    %v294 = vpop.trf.xlu0
    %v295 = vpop.trf.xlu0
    %v296 = vpop.trf.xlu0
    %v297 = vpop.trf.xlu0
    %v298 = vpop.trf.xlu0
    %v299 = vpop.trf.xlu0
    %v300 = vpop.trf.xlu0
    %v301 = vpop.trf.xlu0
    %vm302 = vcmask 130048
    %v304 = vsel %vm302, %v62, 0
    %v307 = vsel %vm302, %v63, 0
    %v310 = vsel %vm302, %v94, 0
    %v313 = vsel %vm302, %v95, 0
    %v316 = vsel %vm302, %v126, 0
    %v319 = vsel %vm302, %v127, 0
    %v322 = vsel %vm302, %v158, 0
    %v325 = vsel %vm302, %v159, 0
    %v328 = vsel %vm302, %v190, 0
    %v331 = vsel %vm302, %v191, 0
    %v334 = vsel %vm302, %v222, 0
    %v337 = vsel %vm302, %v223, 0
    %v340 = vsel %vm302, %v254, 0
    %v343 = vsel %vm302, %v255, 0
    %v346 = vsel %vm302, %v286, 0
    %v349 = vsel %vm302, %v287, 0
    %v352 = vsel %vm302, %v45, 0
    %354 = vmatprep.subr.mxu0 0.0
    %355 = vmatpush1.xpose.msra.mxu0 0.0
    %356 = vmatprep.subr.mxu0 0.0
    %357 = vmatpush1.xpose.msra.mxu0 0.0
    %358 = vmatprep.subr.mxu0 0.0
    %359 = vmatpush1.xpose.msra.mxu0 0.0
    %360 = vmatprep.subr.mxu0 0.0
    %361 = vmatpush1.xpose.msra.mxu0 0.0
    %362 = vmatprep.subr.mxu0 0.0
    %363 = vmatpush1.xpose.msra.mxu0 0.0
    %364 = vmatprep.subr.mxu0 0.0
    %365 = vmatpush1.xpose.msra.mxu0 0.0
    %366 = vmatprep.subr.mxu0 0.0
    %367 = vmatpush1.xpose.msra.mxu0 0.0
    %368 = vmatprep.subr.mxu0 0.0
    %369 = vmatpush1.xpose.msra.mxu0 0.0
    %370 = vmatprep.subr.mxu0 0.0
    %371 = vmatpush1.xpose.msra.mxu0 0.0
    %372 = vmatprep.subr.mxu0 0.0
    %373 = vmatpush1.xpose.msra.mxu0 0.0
    %374 = vmatprep.subr.mxu0 0.0
    %375 = vmatpush1.xpose.msra.mxu0 0.0
    %376 = vmatprep.subr.mxu0 0.0
    %377 = vmatpush1.xpose.msra.mxu0 0.0
    %378 = vmatprep.subr.mxu0 0.0
    %379 = vmatpush1.xpose.msra.mxu0 0.0
    %380 = vmatprep.subr.mxu0 0.0
    %381 = vmatpush1.xpose.msra.mxu0 0.0
    %382 = vmatprep.subr.mxu0 0.0
    %383 = vmatpush1.xpose.msra.mxu0 0.0
    %384 = vmatprep.subr.mxu0 0.0
    %385 = vmatpush1.xpose.msra.mxu0 %v352
    %386 = vmatprep.subr.mxu0 0.0
    %387 = vmatpush2.xpose.msra.mxu0 0.0
    %388 = vmatprep.subr.mxu0 0.0
    %389 = vmatpush2.xpose.msra.mxu0 0.0
    %390 = vmatprep.subr.mxu0 0.0
    %391 = vmatpush2.xpose.msra.mxu0 0.0
    %392 = vmatprep.subr.mxu0 0.0
    %393 = vmatpush2.xpose.msra.mxu0 0.0
    %394 = vmatprep.subr.mxu0 0.0
    %395 = vmatpush2.xpose.msra.mxu0 0.0
    %396 = vmatprep.subr.mxu0 0.0
    %397 = vmatpush2.xpose.msra.mxu0 0.0
    %398 = vmatprep.subr.mxu0 0.0
    %399 = vmatpush2.xpose.msra.mxu0 0.0
    %400 = vmatprep.subr.mxu0 0.0
    %401 = vmatpush2.xpose.msra.mxu0 0.0
    %402 = vmatprep.subr.mxu0 0.0
    %403 = vmatpush2.xpose.msra.mxu0 0.0
    %404 = vmatprep.subr.mxu0 0.0
    %405 = vmatpush2.xpose.msra.mxu0 0.0
    %406 = vmatprep.subr.mxu0 0.0
    %407 = vmatpush2.xpose.msra.mxu0 0.0
    %408 = vmatprep.subr.mxu0 0.0
    %409 = vmatpush2.xpose.msra.mxu0 0.0
    %410 = vmatprep.subr.mxu0 0.0
    %411 = vmatpush2.xpose.msra.mxu0 0.0
    %412 = vmatprep.subr.mxu0 0.0
    %413 = vmatpush2.xpose.msra.mxu0 0.0
    %414 = vmatprep.subr.mxu0 0.0
    %415 = vmatpush2.xpose.msra.mxu0 0.0
    %416 = vmatprep.subr.mxu0 0.0
    %417 = vmatpush2.xpose.msra.mxu0 0.0
    %418 = vmatprep.mubr.f32.mxu0 0.0
    %419 = vmatmul.mubr.f32.gmra.mxu0 %v304
    %v420 = vpop.f32.mrf.mxu0
    %v421 = vadd.f32 0.0, %v420
    %v422 = vpop.f32.mrf.mxu0
    %423 = vmatprep.mubr.f32.mxu0 0.0
    %424 = vmatmul.mubr.f32.gmra.mxu0 %v307
    %v425 = vpop.f32.mrf.mxu0
    %v426 = vadd.f32 0.0, %v425
    %v427 = vpop.f32.mrf.mxu0
    %428 = vmatprep.mubr.f32.mxu0 0.0
    %429 = vmatmul.mubr.f32.gmra.mxu0 %v310
    %v430 = vpop.f32.mrf.mxu0
    %v431 = vadd.f32 0.0, %v430
    %v432 = vpop.f32.mrf.mxu0
    %433 = vmatprep.mubr.f32.mxu0 0.0
    %434 = vmatmul.mubr.f32.gmra.mxu0 %v313
    %v435 = vpop.f32.mrf.mxu0
    %v436 = vadd.f32 0.0, %v435
    %v437 = vpop.f32.mrf.mxu0
    %438 = vmatprep.mubr.f32.mxu0 0.0
    %439 = vmatmul.mubr.f32.gmra.mxu0 %v316
    %v440 = vpop.f32.mrf.mxu0
    %v441 = vadd.f32 0.0, %v440
    %v442 = vpop.f32.mrf.mxu0
    %443 = vmatprep.mubr.f32.mxu0 0.0
    %444 = vmatmul.mubr.f32.gmra.mxu0 %v319
    %v445 = vpop.f32.mrf.mxu0
    %v446 = vadd.f32 0.0, %v445
    %v447 = vpop.f32.mrf.mxu0
    %448 = vmatprep.mubr.f32.mxu0 0.0
    %449 = vmatmul.mubr.f32.gmra.mxu0 %v322
    %v450 = vpop.f32.mrf.mxu0
    %v451 = vadd.f32 0.0, %v450
    %v452 = vpop.f32.mrf.mxu0
    %453 = vmatprep.mubr.f32.mxu0 0.0
    %454 = vmatmul.mubr.f32.gmra.mxu0 %v325
    %v455 = vpop.f32.mrf.mxu0
    %v456 = vadd.f32 0.0, %v455
    %v457 = vpop.f32.mrf.mxu0
    %458 = vmatprep.mubr.f32.mxu0 0.0
    %459 = vmatmul.mubr.f32.gmra.mxu0 %v328
    %v460 = vpop.f32.mrf.mxu0
    %v461 = vadd.f32 0.0, %v460
    %v462 = vpop.f32.mrf.mxu0
    %463 = vmatprep.mubr.f32.mxu0 0.0
    %464 = vmatmul.mubr.f32.gmra.mxu0 %v331
    %v465 = vpop.f32.mrf.mxu0
    %v466 = vadd.f32 0.0, %v465
    %v467 = vpop.f32.mrf.mxu0
    %468 = vmatprep.mubr.f32.mxu0 0.0
    %469 = vmatmul.mubr.f32.gmra.mxu0 %v334
    %v470 = vpop.f32.mrf.mxu0
    %v471 = vadd.f32 0.0, %v470
    %v472 = vpop.f32.mrf.mxu0
    %473 = vmatprep.mubr.f32.mxu0 0.0
    %474 = vmatmul.mubr.f32.gmra.mxu0 %v337
    %v475 = vpop.f32.mrf.mxu0
    %v476 = vadd.f32 0.0, %v475
    %v477 = vpop.f32.mrf.mxu0
    %478 = vmatprep.mubr.f32.mxu0 0.0
    %479 = vmatmul.mubr.f32.gmra.mxu0 %v340
    %v480 = vpop.f32.mrf.mxu0
    %v481 = vadd.f32 0.0, %v480
    %v482 = vpop.f32.mrf.mxu0
    %483 = vmatprep.mubr.f32.mxu0 0.0
    %484 = vmatmul.mubr.f32.gmra.mxu0 %v343
    %v485 = vpop.f32.mrf.mxu0
    %v486 = vadd.f32 0.0, %v485
    %v487 = vpop.f32.mrf.mxu0
    %488 = vmatprep.mubr.f32.mxu0 0.0
    %489 = vmatmul.mubr.f32.gmra.mxu0 %v346
    %v490 = vpop.f32.mrf.mxu0
    %v491 = vadd.f32 0.0, %v490
    %v492 = vpop.f32.mrf.mxu0
    %493 = vmatprep.mubr.f32.mxu0 0.0
    %494 = vmatmul.mubr.f32.gmra.mxu0 %v349
    %v495 = vpop.f32.mrf.mxu0
    %v496 = vadd.f32 0.0, %v495
    %v497 = vpop.f32.mrf.mxu0
    %498 = vdwg.mxu0
    %499 = vxpose.xlu0.b32.start [1/16] %v421, 128
    %500 = vxpose.xlu0.b32.cont [2/16] %v426, 128
    %501 = vxpose.xlu0.b32.cont [3/16] 0.0, 128
    %502 = vxpose.xlu0.b32.cont [4/16] 0.0, 128
    %503 = vxpose.xlu0.b32.cont [5/16] 0.0, 128
    %504 = vxpose.xlu0.b32.cont [6/16] 0.0, 128
    %505 = vxpose.xlu0.b32.cont [7/16] 0.0, 128
    %506 = vxpose.xlu0.b32.cont [8/16] 0.0, 128
    %507 = vxpose.xlu0.b32.cont [9/16] 0.0, 128
    %508 = vxpose.xlu0.b32.cont [10/16] 0.0, 128
    %509 = vxpose.xlu0.b32.cont [11/16] 0.0, 128
    %510 = vxpose.xlu0.b32.cont [12/16] 0.0, 128
    %511 = vxpose.xlu0.b32.cont [13/16] 0.0, 128
    %512 = vxpose.xlu0.b32.cont [14/16] 0.0, 128
    %513 = vxpose.xlu0.b32.cont [15/16] 0.0, 128
    %514 = vxpose.xlu0.b32.end [16/16] 0.0, 128
    %v515 = vpop.trf.xlu0
    %v516 = vpop.trf.xlu0
    %v517 = vpop.trf.xlu0
    %v518 = vpop.trf.xlu0
    %v519 = vpop.trf.xlu0
    %v520 = vpop.trf.xlu0
    %v521 = vpop.trf.xlu0
    %v522 = vpop.trf.xlu0
    %v523 = vpop.trf.xlu0
    %v524 = vpop.trf.xlu0
    %v525 = vpop.trf.xlu0
    %v526 = vpop.trf.xlu0
    %v527 = vpop.trf.xlu0
    %v528 = vpop.trf.xlu0
    %v529 = vpop.trf.xlu0
    %v530 = vpop.trf.xlu0
    %531 = vxpose.xlu0.b32.start [1/16] %v431, 128
    %532 = vxpose.xlu0.b32.cont [2/16] %v436, 128
    %533 = vxpose.xlu0.b32.cont [3/16] 0.0, 128
    %534 = vxpose.xlu0.b32.cont [4/16] 0.0, 128
    %535 = vxpose.xlu0.b32.cont [5/16] 0.0, 128
    %536 = vxpose.xlu0.b32.cont [6/16] 0.0, 128
    %537 = vxpose.xlu0.b32.cont [7/16] 0.0, 128
    %538 = vxpose.xlu0.b32.cont [8/16] 0.0, 128
    %539 = vxpose.xlu0.b32.cont [9/16] 0.0, 128
    %540 = vxpose.xlu0.b32.cont [10/16] 0.0, 128
    %541 = vxpose.xlu0.b32.cont [11/16] 0.0, 128
    %542 = vxpose.xlu0.b32.cont [12/16] 0.0, 128
    %543 = vxpose.xlu0.b32.cont [13/16] 0.0, 128
    %544 = vxpose.xlu0.b32.cont [14/16] 0.0, 128
    %545 = vxpose.xlu0.b32.cont [15/16] 0.0, 128
    %546 = vxpose.xlu0.b32.end [16/16] 0.0, 128
    %v547 = vpop.trf.xlu0
    %v548 = vpop.trf.xlu0
    %v549 = vpop.trf.xlu0
    %v550 = vpop.trf.xlu0
    %v551 = vpop.trf.xlu0
    %v552 = vpop.trf.xlu0
    %v553 = vpop.trf.xlu0
    %v554 = vpop.trf.xlu0
    %v555 = vpop.trf.xlu0
    %v556 = vpop.trf.xlu0
    %v557 = vpop.trf.xlu0
    %v558 = vpop.trf.xlu0
    %v559 = vpop.trf.xlu0
    %v560 = vpop.trf.xlu0
    %v561 = vpop.trf.xlu0
    %v562 = vpop.trf.xlu0
    %563 = vxpose.xlu0.b32.start [1/16] %v441, 128
    %564 = vxpose.xlu0.b32.cont [2/16] %v446, 128
    %565 = vxpose.xlu0.b32.cont [3/16] 0.0, 128
    %566 = vxpose.xlu0.b32.cont [4/16] 0.0, 128
    %567 = vxpose.xlu0.b32.cont [5/16] 0.0, 128
    %568 = vxpose.xlu0.b32.cont [6/16] 0.0, 128
    %569 = vxpose.xlu0.b32.cont [7/16] 0.0, 128
    %570 = vxpose.xlu0.b32.cont [8/16] 0.0, 128
    %571 = vxpose.xlu0.b32.cont [9/16] 0.0, 128
    %572 = vxpose.xlu0.b32.cont [10/16] 0.0, 128
    %573 = vxpose.xlu0.b32.cont [11/16] 0.0, 128
    %574 = vxpose.xlu0.b32.cont [12/16] 0.0, 128
    %575 = vxpose.xlu0.b32.cont [13/16] 0.0, 128
    %576 = vxpose.xlu0.b32.cont [14/16] 0.0, 128
    %577 = vxpose.xlu0.b32.cont [15/16] 0.0, 128
    %578 = vxpose.xlu0.b32.end [16/16] 0.0, 128
    %v579 = vpop.trf.xlu0
    %v580 = vpop.trf.xlu0
    %v581 = vpop.trf.xlu0
    %v582 = vpop.trf.xlu0
    %v583 = vpop.trf.xlu0
    %v584 = vpop.trf.xlu0
    %v585 = vpop.trf.xlu0
    %v586 = vpop.trf.xlu0
    %v587 = vpop.trf.xlu0
    %v588 = vpop.trf.xlu0
    %v589 = vpop.trf.xlu0
    %v590 = vpop.trf.xlu0
    %v591 = vpop.trf.xlu0
    %v592 = vpop.trf.xlu0
    %v593 = vpop.trf.xlu0
    %v594 = vpop.trf.xlu0
    %595 = vxpose.xlu0.b32.start [1/16] %v451, 128
    %596 = vxpose.xlu0.b32.cont [2/16] %v456, 128
    %597 = vxpose.xlu0.b32.cont [3/16] 0.0, 128
    %598 = vxpose.xlu0.b32.cont [4/16] 0.0, 128
    %599 = vxpose.xlu0.b32.cont [5/16] 0.0, 128
    %600 = vxpose.xlu0.b32.cont [6/16] 0.0, 128
    %601 = vxpose.xlu0.b32.cont [7/16] 0.0, 128
    %602 = vxpose.xlu0.b32.cont [8/16] 0.0, 128
    %603 = vxpose.xlu0.b32.cont [9/16] 0.0, 128
    %604 = vxpose.xlu0.b32.cont [10/16] 0.0, 128
    %605 = vxpose.xlu0.b32.cont [11/16] 0.0, 128
    %606 = vxpose.xlu0.b32.cont [12/16] 0.0, 128
    %607 = vxpose.xlu0.b32.cont [13/16] 0.0, 128
    %608 = vxpose.xlu0.b32.cont [14/16] 0.0, 128
    %609 = vxpose.xlu0.b32.cont [15/16] 0.0, 128
    %610 = vxpose.xlu0.b32.end [16/16] 0.0, 128
    %v611 = vpop.trf.xlu0
    %v612 = vpop.trf.xlu0
    %v613 = vpop.trf.xlu0
    %v614 = vpop.trf.xlu0
    %v615 = vpop.trf.xlu0
    %v616 = vpop.trf.xlu0
    %v617 = vpop.trf.xlu0
    %v618 = vpop.trf.xlu0
    %v619 = vpop.trf.xlu0
    %v620 = vpop.trf.xlu0
    %v621 = vpop.trf.xlu0
    %v622 = vpop.trf.xlu0
    %v623 = vpop.trf.xlu0
    %v624 = vpop.trf.xlu0
    %v625 = vpop.trf.xlu0
    %v626 = vpop.trf.xlu0
    %627 = vxpose.xlu0.b32.start [1/16] %v461, 128
    %628 = vxpose.xlu0.b32.cont [2/16] %v466, 128
    %629 = vxpose.xlu0.b32.cont [3/16] 0.0, 128
    %630 = vxpose.xlu0.b32.cont [4/16] 0.0, 128
    %631 = vxpose.xlu0.b32.cont [5/16] 0.0, 128
    %632 = vxpose.xlu0.b32.cont [6/16] 0.0, 128
    %633 = vxpose.xlu0.b32.cont [7/16] 0.0, 128
    %634 = vxpose.xlu0.b32.cont [8/16] 0.0, 128
    %635 = vxpose.xlu0.b32.cont [9/16] 0.0, 128
    %636 = vxpose.xlu0.b32.cont [10/16] 0.0, 128
    %637 = vxpose.xlu0.b32.cont [11/16] 0.0, 128
    %638 = vxpose.xlu0.b32.cont [12/16] 0.0, 128
    %639 = vxpose.xlu0.b32.cont [13/16] 0.0, 128
    %640 = vxpose.xlu0.b32.cont [14/16] 0.0, 128
    %641 = vxpose.xlu0.b32.cont [15/16] 0.0, 128
    %642 = vxpose.xlu0.b32.end [16/16] 0.0, 128
    %v643 = vpop.trf.xlu0
    %v644 = vpop.trf.xlu0
    %v645 = vpop.trf.xlu0
    %v646 = vpop.trf.xlu0
    %v647 = vpop.trf.xlu0
    %v648 = vpop.trf.xlu0
    %v649 = vpop.trf.xlu0
    %v650 = vpop.trf.xlu0
    %v651 = vpop.trf.xlu0
    %v652 = vpop.trf.xlu0
    %v653 = vpop.trf.xlu0
    %v654 = vpop.trf.xlu0
    %v655 = vpop.trf.xlu0
    %v656 = vpop.trf.xlu0
    %v657 = vpop.trf.xlu0
    %v658 = vpop.trf.xlu0
    %659 = vxpose.xlu0.b32.start [1/16] %v471, 128
    %660 = vxpose.xlu0.b32.cont [2/16] %v476, 128
    %661 = vxpose.xlu0.b32.cont [3/16] 0.0, 128
    %662 = vxpose.xlu0.b32.cont [4/16] 0.0, 128
    %663 = vxpose.xlu0.b32.cont [5/16] 0.0, 128
    %664 = vxpose.xlu0.b32.cont [6/16] 0.0, 128
    %665 = vxpose.xlu0.b32.cont [7/16] 0.0, 128
    %666 = vxpose.xlu0.b32.cont [8/16] 0.0, 128
    %667 = vxpose.xlu0.b32.cont [9/16] 0.0, 128
    %668 = vxpose.xlu0.b32.cont [10/16] 0.0, 128
    %669 = vxpose.xlu0.b32.cont [11/16] 0.0, 128
    %670 = vxpose.xlu0.b32.cont [12/16] 0.0, 128
    %671 = vxpose.xlu0.b32.cont [13/16] 0.0, 128
    %672 = vxpose.xlu0.b32.cont [14/16] 0.0, 128
    %673 = vxpose.xlu0.b32.cont [15/16] 0.0, 128
    %674 = vxpose.xlu0.b32.end [16/16] 0.0, 128
    %v675 = vpop.trf.xlu0
    %v676 = vpop.trf.xlu0
    %v677 = vpop.trf.xlu0
    %v678 = vpop.trf.xlu0
    %v679 = vpop.trf.xlu0
    %v680 = vpop.trf.xlu0
    %v681 = vpop.trf.xlu0
    %v682 = vpop.trf.xlu0
    %v683 = vpop.trf.xlu0
    %v684 = vpop.trf.xlu0
    %v685 = vpop.trf.xlu0
    %v686 = vpop.trf.xlu0
    %v687 = vpop.trf.xlu0
    %v688 = vpop.trf.xlu0
    %v689 = vpop.trf.xlu0
    %v690 = vpop.trf.xlu0
    %691 = vxpose.xlu0.b32.start [1/16] %v481, 128
    %692 = vxpose.xlu0.b32.cont [2/16] %v486, 128
    %693 = vxpose.xlu0.b32.cont [3/16] 0.0, 128
    %694 = vxpose.xlu0.b32.cont [4/16] 0.0, 128
    %695 = vxpose.xlu0.b32.cont [5/16] 0.0, 128
    %696 = vxpose.xlu0.b32.cont [6/16] 0.0, 128
    %697 = vxpose.xlu0.b32.cont [7/16] 0.0, 128
    %698 = vxpose.xlu0.b32.cont [8/16] 0.0, 128
    %699 = vxpose.xlu0.b32.cont [9/16] 0.0, 128
    %700 = vxpose.xlu0.b32.cont [10/16] 0.0, 128
    %701 = vxpose.xlu0.b32.cont [11/16] 0.0, 128
    %702 = vxpose.xlu0.b32.cont [12/16] 0.0, 128
    %703 = vxpose.xlu0.b32.cont [13/16] 0.0, 128
    %704 = vxpose.xlu0.b32.cont [14/16] 0.0, 128
    %705 = vxpose.xlu0.b32.cont [15/16] 0.0, 128
    %706 = vxpose.xlu0.b32.end [16/16] 0.0, 128
    %v707 = vpop.trf.xlu0
    %v708 = vpop.trf.xlu0
    %v709 = vpop.trf.xlu0
    %v710 = vpop.trf.xlu0
    %v711 = vpop.trf.xlu0
    %v712 = vpop.trf.xlu0
    %v713 = vpop.trf.xlu0
    %v714 = vpop.trf.xlu0
    %v715 = vpop.trf.xlu0
    %v716 = vpop.trf.xlu0
    %v717 = vpop.trf.xlu0
    %v718 = vpop.trf.xlu0
    %v719 = vpop.trf.xlu0
    %v720 = vpop.trf.xlu0
    %v721 = vpop.trf.xlu0
    %v722 = vpop.trf.xlu0
    %723 = vxpose.xlu0.b32.start [1/16] %v491, 128
    %724 = vxpose.xlu0.b32.cont [2/16] %v496, 128
    %725 = vxpose.xlu0.b32.cont [3/16] 0.0, 128
    %726 = vxpose.xlu0.b32.cont [4/16] 0.0, 128
    %727 = vxpose.xlu0.b32.cont [5/16] 0.0, 128
    %728 = vxpose.xlu0.b32.cont [6/16] 0.0, 128
    %729 = vxpose.xlu0.b32.cont [7/16] 0.0, 128
    %730 = vxpose.xlu0.b32.cont [8/16] 0.0, 128
    %731 = vxpose.xlu0.b32.cont [9/16] 0.0, 128
    %732 = vxpose.xlu0.b32.cont [10/16] 0.0, 128
    %733 = vxpose.xlu0.b32.cont [11/16] 0.0, 128
    %734 = vxpose.xlu0.b32.cont [12/16] 0.0, 128
    %735 = vxpose.xlu0.b32.cont [13/16] 0.0, 128
    %736 = vxpose.xlu0.b32.cont [14/16] 0.0, 128
    %737 = vxpose.xlu0.b32.cont [15/16] 0.0, 128
    %738 = vxpose.xlu0.b32.end [16/16] 0.0, 128
    %v739 = vpop.trf.xlu0
    %v740 = vpop.trf.xlu0
    %v741 = vpop.trf.xlu0
    %v742 = vpop.trf.xlu0
    %v743 = vpop.trf.xlu0
    %v744 = vpop.trf.xlu0
    %v745 = vpop.trf.xlu0
    %v746 = vpop.trf.xlu0
    %v747 = vpop.trf.xlu0
    %v748 = vpop.trf.xlu0
    %v749 = vpop.trf.xlu0
    %v750 = vpop.trf.xlu0
    %v751 = vpop.trf.xlu0
    %v752 = vpop.trf.xlu0
    %v753 = vpop.trf.xlu0
    %v754 = vpop.trf.xlu0
    %v755 = vld [vmem:[%s2] sm:$0xff]
    %v756 = vld [vmem:[%s2 + $0x8] sm:$0xff]
    %v758 = vsel %vm302, %v515, 0
    %v761 = vsel %vm302, %v547, 0
    %v764 = vsel %vm302, %v579, 0
    %v767 = vsel %vm302, %v611, 0
    %v770 = vsel %vm302, %v643, 0
    %v773 = vsel %vm302, %v675, 0
    %v776 = vsel %vm302, %v707, 0
    %v779 = vsel %vm302, %v739, 0
    %781 = vmatprep.subr.mxu0 0.0
    %782 = vmatpush1.msra.mxu0 0.0
    %783 = vmatprep.subr.mxu0 0.0
    %784 = vmatpush1.msra.mxu0 0.0
    %785 = vmatprep.subr.mxu0 0.0
    %786 = vmatpush1.msra.mxu0 0.0
    %787 = vmatprep.subr.mxu0 0.0
    %788 = vmatpush1.msra.mxu0 0.0
    %789 = vmatprep.subr.mxu0 0.0
    %790 = vmatpush1.msra.mxu0 0.0
    %791 = vmatprep.subr.mxu0 0.0
    %792 = vmatpush1.msra.mxu0 0.0
    %793 = vmatprep.subr.mxu0 0.0
    %794 = vmatpush1.msra.mxu0 0.0
    %795 = vmatprep.subr.mxu0 0.0
    %796 = vmatpush1.msra.mxu0 0.0
    %797 = vmatprep.subr.mxu0 0.0
    %798 = vmatpush1.msra.mxu0 0.0
    %799 = vmatprep.subr.mxu0 0.0
    %800 = vmatpush1.msra.mxu0 0.0
    %801 = vmatprep.subr.mxu0 0.0
    %802 = vmatpush1.msra.mxu0 0.0
    %803 = vmatprep.subr.mxu0 0.0
    %804 = vmatpush1.msra.mxu0 0.0
    %805 = vmatprep.subr.mxu0 0.0
    %806 = vmatpush1.msra.mxu0 0.0
    %807 = vmatprep.subr.mxu0 0.0
    %808 = vmatpush1.msra.mxu0 0.0
    %809 = vmatprep.subr.mxu0 0.0
    %810 = vmatpush1.msra.mxu0 %v756
    %811 = vmatprep.subr.mxu0 0.0
    %812 = vmatpush1.msra.mxu0 %v755
    %813 = vmatprep.subr.mxu0 0.0
    %814 = vmatpush2.msra.mxu0 0.0
    %815 = vmatprep.subr.mxu0 0.0
    %816 = vmatpush2.msra.mxu0 0.0
    %817 = vmatprep.subr.mxu0 0.0
    %818 = vmatpush2.msra.mxu0 0.0
    %819 = vmatprep.subr.mxu0 0.0
    %820 = vmatpush2.msra.mxu0 0.0
    %821 = vmatprep.subr.mxu0 0.0
    %822 = vmatpush2.msra.mxu0 0.0
    %823 = vmatprep.subr.mxu0 0.0
    %824 = vmatpush2.msra.mxu0 0.0
    %825 = vmatprep.subr.mxu0 0.0
    %826 = vmatpush2.msra.mxu0 0.0
    %827 = vmatprep.subr.mxu0 0.0
    %828 = vmatpush2.msra.mxu0 0.0
    %829 = vmatprep.subr.mxu0 0.0
    %830 = vmatpush2.msra.mxu0 0.0
    %831 = vmatprep.subr.mxu0 0.0
    %832 = vmatpush2.msra.mxu0 0.0
    %833 = vmatprep.subr.mxu0 0.0
    %834 = vmatpush2.msra.mxu0 0.0
    %835 = vmatprep.subr.mxu0 0.0
    %836 = vmatpush2.msra.mxu0 0.0
    %837 = vmatprep.subr.mxu0 0.0
    %838 = vmatpush2.msra.mxu0 0.0
    %839 = vmatprep.subr.mxu0 0.0
    %840 = vmatpush2.msra.mxu0 0.0
    %841 = vmatprep.subr.mxu0 0.0
    %842 = vmatpush2.msra.mxu0 0.0
    %843 = vmatprep.subr.mxu0 0.0
    %844 = vmatpush2.msra.mxu0 0.0
    %845 = vmatprep.mubr.f32.mxu0 0.0
    %846 = vmatmul.mubr.f32.gmra.mxu0 %v758
    %v847 = vpop.f32.mrf.mxu0
    %v848 = vadd.f32 0.0, %v847
    %v849 = vpop.f32.mrf.mxu0
    %850 = vmatprep.mubr.f32.mxu0 0.0
    %851 = vmatmul.mubr.f32.gmra.mxu0 %v761
    %v852 = vpop.f32.mrf.mxu0
    %v853 = vadd.f32 0.0, %v852
    %v854 = vpop.f32.mrf.mxu0
    %855 = vmatprep.mubr.f32.mxu0 0.0
    %856 = vmatmul.mubr.f32.gmra.mxu0 %v764
    %v857 = vpop.f32.mrf.mxu0
    %v858 = vadd.f32 0.0, %v857
    %v859 = vpop.f32.mrf.mxu0
    %860 = vmatprep.mubr.f32.mxu0 0.0
    %861 = vmatmul.mubr.f32.gmra.mxu0 %v767
    %v862 = vpop.f32.mrf.mxu0
    %v863 = vadd.f32 0.0, %v862
    %v864 = vpop.f32.mrf.mxu0
    %865 = vmatprep.mubr.f32.mxu0 0.0
    %866 = vmatmul.mubr.f32.gmra.mxu0 %v770
    %v867 = vpop.f32.mrf.mxu0
    %v868 = vadd.f32 0.0, %v867
    %v869 = vpop.f32.mrf.mxu0
    %870 = vmatprep.mubr.f32.mxu0 0.0
    %871 = vmatmul.mubr.f32.gmra.mxu0 %v773
    %v872 = vpop.f32.mrf.mxu0
    %v873 = vadd.f32 0.0, %v872
    %v874 = vpop.f32.mrf.mxu0
    %875 = vmatprep.mubr.f32.mxu0 0.0
    %876 = vmatmul.mubr.f32.gmra.mxu0 %v776
    %v877 = vpop.f32.mrf.mxu0
    %v878 = vadd.f32 0.0, %v877
    %v879 = vpop.f32.mrf.mxu0
    %880 = vmatprep.mubr.f32.mxu0 0.0
    %881 = vmatmul.mubr.f32.gmra.mxu0 %v779
    %v882 = vpop.f32.mrf.mxu0
    %v883 = vadd.f32 0.0, %v882
    %v884 = vpop.f32.mrf.mxu0
    %885 = vdwg.mxu0
    %vm886 = vcmask 64512
    %887 = vst.msk [vmem:[#allocation5] sm:$0xff] %vm886, %v848
    %888 = vst.msk [vmem:[#allocation5 + $0x8] sm:$0xff] %vm886, %v853
    %889 = vst.msk [vmem:[#allocation5 + $0x10] sm:$0xff] %vm886, %v858
    %890 = vst.msk [vmem:[#allocation5 + $0x18] sm:$0xff] %vm886, %v863
    %891 = vst.msk [vmem:[#allocation5 + $0x20] sm:$0xff] %vm886, %v868
    %892 = vst.msk [vmem:[#allocation5 + $0x28] sm:$0xff] %vm886, %v873
    %893 = vst.msk [vmem:[#allocation5 + $0x30] sm:$0xff] %vm886, %v878
    %894 = vst.msk [vmem:[#allocation5 + $0x38] sm:$0xff] %vm886, %v883
    // Predicated region
    $region18: #{tpu_custom_call.1} parent=1 // pred_check
      _
    $region19: #{tpu_custom_call.1} parent=1 // pred_check_branch
      %896 = sbr.rel (0) target = $region21
    $region20: #{tpu_custom_call.1} parent=1 // pred_region
      %s898 = ssub.s32 1024, 1024
      %899 = vsyncadd [#allocation4], %s898
      %s900 = sshll.u32 [#allocation5], 4
      %s901 = int_to_ptr.vmem [resolvable:$true] %s900
      %906 = dma.vmem_to_hbm [thread:$0]  %s901, 1024, %s3, [#allocation4], 128, 128, 8
    $region21: #{tpu_custom_call.1} parent=1 // pred_fallthru
      _
    // Predicated region
    $region22: #{tpu_custom_call.1} parent=1 // pred_check
      _
    $region23: #{tpu_custom_call.1} parent=1 // pred_check_branch
      %908 = sbr.rel (0) target = $region25
    $region24: #{tpu_custom_call.1} parent=1 // pred_region
      %909 = dma.done [#allocation4], 1024
    $region25: #{tpu_custom_call.1} parent=1 // pred_fallthru
      _
    %910 = vsyncpa [#allocation3], 1
    %911 = vsyncpa [#allocation4], 1

</llo_original>
